<compile_context>
chip_gen: v6e
topology: v6e:2x2x1
jax: 0.10.0
libtpu: 0.0.40
codegen_flags: <defaults>
</compile_context>

<pallas_src>
import jax
import jax.numpy as jnp
from jax.experimental import pallas as pl
from jax.experimental.pallas import tpu as pltpu

_LANE = 128          # lane width of a vreg (fast axis)
_ROW_ALIGN = 16      # bf16 sublane pack = 16 rows per packed vreg
_SINGLE_TILE_MAX = 512   # below this, one grid step (per-step overhead >> compute)
_MAX_TILE = 1024         # large-batch tile cap (multiple of 256, VMEM friendly on v5e/v7x)


def _round_up(n, m):
    return (n + m - 1) // m * m


def _elu_like(x):
    # torch.where(x > 0, x, torch.exp(x) - 1)   (kept as exp-1 to match the module exactly)
    return jnp.where(x > 0, x, jnp.exp(x) - 1.0)


def mlp_kernel(x_ref, w1_ref, b1_ref, w2_ref, b2_ref, w3_ref, b3_ref, o_ref):
    # x_ref: (TB, d_in) matmul dtype; weights in matmul dtype; biases f32;
    # all matmuls accumulate in f32 on the MXU; activations run on the f32 VPU/EUP path.
    x = x_ref[...]
    h = jnp.dot(x, w1_ref[...], preferred_element_type=jnp.float32)           # MXU
    h = _elu_like(h + b1_ref[...])                                            # f32 VPU/EUP
    # dropout: identity in eval mode
    h = jnp.dot(h.astype(w2_ref.dtype), w2_ref[...],
                preferred_element_type=jnp.float32)                           # MXU
    h = _elu_like(h + b2_ref[...])
    # dropout: identity in eval mode
    out = jnp.dot(h.astype(w3_ref.dtype), w3_ref[...],
                  preferred_element_type=jnp.float32)                         # MXU
    o_ref[...] = (out + b3_ref[...]).astype(o_ref.dtype)


def _choose_batch_tile(B):
    """16-row aligned batch tile. One step for small B; >=2 steps (v7x megacore)
    with <=1024-row tiles once per-step compute/DMA is worth amortizing."""
    b16 = _round_up(B, _ROW_ALIGN)
    if b16 <= _SINGLE_TILE_MAX:
        return b16
    tile = _round_up(pl.cdiv(b16, 2), _ROW_ALIGN)
    return min(tile, _MAX_TILE)


def mlp_forward(x, params, *, matmul_dtype=jnp.bfloat16, out_dtype=None, batch_tile=None):
    """x: (B, input_size) float32.  params: dict of [in,out]-transposed weights + (1,h) biases."""
    if out_dtype is None:
        out_dtype = matmul_dtype
    w1, b1, w2, b2, w3, b3 = (params["w1"], params["b1"], params["w2"],
                              params["b2"], params["w3"], params["b3"])
    B, d_in = x.shape
    h1, h2, d_out = w1.shape[1], w2.shape[1], w3.shape[1]

    # --- lane-dense 128 padding of hidden/output feature axes only (d_in stays unpadded) ---
    h1_p = _round_up(h1, _LANE)
    h2_p = _round_up(h2, _LANE)
    d_out_p = _round_up(d_out, _LANE)

    def pad2(a, rows, cols):
        pr, pc = rows - a.shape[0], cols - a.shape[1]
        return a if (pr == 0 and pc == 0) else jnp.pad(a, ((0, pr), (0, pc)))

    w1p = pad2(w1, d_in, h1_p).astype(matmul_dtype)
    w2p = pad2(w2, h1_p, h2_p).astype(matmul_dtype)
    w3p = pad2(w3, h2_p, d_out_p).astype(matmul_dtype)
    b1p = pad2(b1, 1, h1_p).astype(jnp.float32)
    b2p = pad2(b2, 1, h2_p).astype(jnp.float32)
    b3p = pad2(b3, 1, d_out_p).astype(jnp.float32)

    # --- batch tiling (only the batch axis is padded) ---
    if batch_tile is None:
        batch_tile = _choose_batch_tile(B)
    assert batch_tile % _ROW_ALIGN == 0, "batch_tile must be a multiple of 16"
    B_p = _round_up(B, batch_tile)
    xp = x.astype(matmul_dtype)
    if B_p != B:
        xp = jnp.pad(xp, ((0, B_p - B), (0, 0)))
    grid = (B_p // batch_tile,)

    in_item = jnp.dtype(matmul_dtype).itemsize
    out_item = jnp.dtype(out_dtype).itemsize

    # Cost hint for XLA's scheduler, in TRUE (unpadded) dims.
    flops = 2 * B * (d_in * h1 + h1 * h2 + h2 * d_out)
    bytes_accessed = (
        B * d_in * in_item
        + (d_in * h1 + h1 * h2 + h2 * d_out) * in_item
        + (h1 + h2 + d_out) * 4
        + B * d_out * out_item
    )
    cost = pl.CostEstimate(flops=flops,
                           transcendentals=B * (h1 + h2),
                           bytes_accessed=bytes_accessed)

    # VMEM budget: double-buffered x/out tiles + resident weights/biases + f32/bf16
    # intermediates, with 2x headroom (floor 32 MiB, cap 64 MiB = safe on every chip).
    vmem_est = (
        2 * (batch_tile * d_in * in_item + batch_tile * d_out_p * out_item)
        + 2 * ((d_in * h1_p + h1_p * h2_p + h2_p * d_out_p) * in_item
               + (h1_p + h2_p + d_out_p) * 4)
        + batch_tile * (h1_p + h2_p) * (4 + in_item)
    )
    vmem_limit = int(min(max(2 * vmem_est + (4 << 20), 32 << 20), 64 << 20))

    out_p = pl.pallas_call(
        mlp_kernel,
        out_shape=jax.ShapeDtypeStruct((B_p, d_out_p), out_dtype),
        grid_spec=pltpu.PrefetchScalarGridSpec(
            num_scalar_prefetch=0,
            grid=grid,
            in_specs=[
                pl.BlockSpec((batch_tile, d_in), lambda i: (i, 0)),     # x: tiled over batch, full d_in
                pl.BlockSpec((d_in, h1_p), lambda i: (0, 0)),           # w1 (resident)
                pl.BlockSpec((1, h1_p), lambda i: (0, 0)),              # b1
                pl.BlockSpec((h1_p, h2_p), lambda i: (0, 0)),           # w2
                pl.BlockSpec((1, h2_p), lambda i: (0, 0)),              # b2
                pl.BlockSpec((h2_p, d_out_p), lambda i: (0, 0)),        # w3
                pl.BlockSpec((1, d_out_p), lambda i: (0, 0)),           # b3
            ],
            out_specs=pl.BlockSpec((batch_tile, d_out_p), lambda i: (i, 0)),
        ),
        compiler_params=pltpu.CompilerParams(
            dimension_semantics=("parallel",),
            vmem_limit_bytes=vmem_limit,
        ),
        cost_estimate=cost,
    )(xp, w1p, b1p, w2p, b2p, w3p, b3p)

    # Strip batch / output-lane padding.  (If the consumer can accept the padded
    # (B_p, d_out_p) slab, return out_p directly and skip this extra pass.)
    return out_p[:B, :d_out]


def init_params(key, input_size, hidden_size, output_size):
    """He (Kaiming) normal init, fan_in mode, relu gain (std = sqrt(2 / fan_in)); zero biases.
    Weights stored transposed [in, out] for the kernel."""
    k1, k2, k3 = jax.random.split(key, 3)

    def he(k, fan_in, fan_out):
        std = jnp.sqrt(2.0 / fan_in)
        # PyTorch weight is (out, in); sample that shape then transpose -> (in, out).
        w = jax.random.normal(k, (fan_out, fan_in), dtype=jnp.float32) * std
        return jnp.transpose(w)

    h0, h1 = hidden_size
    return {
        "w1": he(k1, input_size, h0),   "b1": jnp.zeros((1, h0), jnp.float32),
        "w2": he(k2, h0, h1),           "b2": jnp.zeros((1, h1), jnp.float32),
        "w3": he(k3, h1, output_size),  "b3": jnp.zeros((1, output_size), jnp.float32),
    }


def mlp_reference(x, p, matmul_dtype=jnp.float32):
    """Pure-JAX reference with the same matmul operand dtype / f32 accumulation as the kernel."""
    def mm(a, w):
        return jnp.dot(a.astype(matmul_dtype), w.astype(matmul_dtype),
                       preferred_element_type=jnp.float32)
    h = _elu_like(mm(x, p["w1"]) + p["b1"])
    h = _elu_like(mm(h, p["w2"]) + p["b2"])
    return mm(h, p["w3"]) + p["b3"]


if __name__ == "__main__":
    input_size = 32
    hidden_size = [64, 48]
    output_size = 10

    key = jax.random.PRNGKey(0)
    kx, kp, kx2 = jax.random.split(key, 3)
    params = init_params(kp, input_size, hidden_size, output_size)

    # 1) Small batch (single grid step), default perf path: bf16 operands + bf16 output.
    batch = 16
    x = jax.random.normal(kx, (batch, input_size), dtype=jnp.float32)
    out_bf16 = jax.block_until_ready(mlp_forward(x, params))
    ref_bf16 = mlp_reference(x, params, matmul_dtype=jnp.bfloat16)
    assert out_bf16.shape == (batch, output_size)
    assert jnp.allclose(out_bf16.astype(jnp.float32), ref_bf16, atol=5e-2, rtol=5e-2), \
        "mismatch vs bf16 reference (small batch)"

    # 2) Full-precision path: f32 operands + f32 output, tight check vs f32 reference.
    out_f32 = jax.block_until_ready(
        mlp_forward(x, params, matmul_dtype=jnp.float32, out_dtype=jnp.float32))
    ref_f32 = mlp_reference(x, params, matmul_dtype=jnp.float32)
    assert jnp.allclose(out_f32, ref_f32, atol=1e-4, rtol=1e-4), "mismatch vs f32 reference"

    # Loose sanity bound: bf16 kernel vs f32 reference.
    assert float(jnp.max(jnp.abs(out_bf16.astype(jnp.float32) - ref_f32))) < 0.5

    # 3) Medium batch that exercises the multi-step "parallel" grid + batch padding.
    batch2 = 600                      # -> 2 grid steps of 304 rows (16-aligned), 8 padded rows
    x2 = jax.random.normal(kx2, (batch2, input_size), dtype=jnp.float32)
    out2 = jax.block_until_ready(mlp_forward(x2, params))
    ref2 = mlp_reference(x2, params, matmul_dtype=jnp.bfloat16)
    assert out2.shape == (batch2, output_size)
    assert jnp.allclose(out2.astype(jnp.float32), ref2, atol=5e-2, rtol=5e-2), \
        "mismatch vs bf16 reference (medium batch, tiled grid)"

    print("KERNEL_OK")
</pallas_src>

<mosaic_0001>
module attributes {stable_mosaic.version = 11 : i64} {
  func.func @mlp_kernel(%arg0: i32, %arg1: memref<16x32xbf16, #tpu.memory_space<vmem>>, %arg2: memref<32x128xbf16, #tpu.memory_space<vmem>>, %arg3: memref<1x128xf32, #tpu.memory_space<vmem>>, %arg4: memref<128x128xbf16, #tpu.memory_space<vmem>>, %arg5: memref<1x128xf32, #tpu.memory_space<vmem>>, %arg6: memref<128x128xbf16, #tpu.memory_space<vmem>>, %arg7: memref<1x128xf32, #tpu.memory_space<vmem>>, %arg8: memref<16x128xbf16, #tpu.memory_space<vmem>>) attributes {dimension_semantics = [#tpu.dimension_semantics<parallel>], iteration_bounds = array<i64: 1>, scalar_prefetch = 0 : i64, scratch_operands = 0 : i64, tpu.core_type = #tpu.core_type<tc>, window_params = [{transform_indices = @transform_0, window_bounds = array<i64: 16, 32>}, {pipeline_mode = #tpu.pipeline_mode<synchronous>, transform_indices = @transform_1, window_bounds = array<i64: 32, 128>}, {pipeline_mode = #tpu.pipeline_mode<synchronous>, transform_indices = @transform_2, window_bounds = array<i64: 1, 128>}, {pipeline_mode = #tpu.pipeline_mode<synchronous>, transform_indices = @transform_3, window_bounds = array<i64: 128, 128>}, {pipeline_mode = #tpu.pipeline_mode<synchronous>, transform_indices = @transform_4, window_bounds = array<i64: 1, 128>}, {pipeline_mode = #tpu.pipeline_mode<synchronous>, transform_indices = @transform_5, window_bounds = array<i64: 128, 128>}, {pipeline_mode = #tpu.pipeline_mode<synchronous>, transform_indices = @transform_6, window_bounds = array<i64: 1, 128>}, {transform_indices = @transform_7, window_bounds = array<i64: 16, 128>}]} {
    %c0 = arith.constant 0 : index
    %c0_0 = arith.constant 0 : index
    %0 = vector.load %arg1[%c0, %c0_0] : memref<16x32xbf16, #tpu.memory_space<vmem>>, vector<16x32xbf16>
    %c0_1 = arith.constant 0 : index
    %c0_2 = arith.constant 0 : index
    %1 = vector.load %arg2[%c0_1, %c0_2] : memref<32x128xbf16, #tpu.memory_space<vmem>>, vector<32x128xbf16>
    %cst = arith.constant dense<0.000000e+00> : vector<16x128xf32>
    %2 = tpu.matmul %0, %1, %cst {dimension_numbers = #tpu.dot_dimension_numbers<[1], [0], [0], [1], [0, 0, 1, 1], [], []>} : vector<16x32xbf16>, vector<32x128xbf16>, vector<16x128xf32> -> vector<16x128xf32>
    %c0_3 = arith.constant 0 : index
    %c0_4 = arith.constant 0 : index
    %3 = vector.load %arg3[%c0_3, %c0_4] : memref<1x128xf32, #tpu.memory_space<vmem>>, vector<1x128xf32>
    %4 = vector.broadcast %3 : vector<1x128xf32> to vector<16x128xf32>
    %5 = arith.addf %2, %4 : vector<16x128xf32>
    %cst_5 = arith.constant 0.000000e+00 : f32
    %6 = vector.broadcast %cst_5 : f32 to vector<16x128xf32>
    %7 = arith.cmpf ogt, %5, %6 : vector<16x128xf32>
    %8 = math.exp %5 : vector<16x128xf32>
    %cst_6 = arith.constant 1.000000e+00 : f32
    %9 = vector.broadcast %cst_6 : f32 to vector<16x128xf32>
    %10 = arith.subf %8, %9 : vector<16x128xf32>
    %11 = arith.select %7, %5, %10 : vector<16x128xi1>, vector<16x128xf32>
    %12 = arith.truncf %11 : vector<16x128xf32> to vector<16x128xbf16>
    %c0_7 = arith.constant 0 : index
    %c0_8 = arith.constant 0 : index
    %13 = vector.load %arg4[%c0_7, %c0_8] : memref<128x128xbf16, #tpu.memory_space<vmem>>, vector<128x128xbf16>
    %cst_9 = arith.constant dense<0.000000e+00> : vector<16x128xf32>
    %14 = tpu.matmul %12, %13, %cst_9 {dimension_numbers = #tpu.dot_dimension_numbers<[1], [0], [0], [1], [0, 0, 1, 1], [], []>} : vector<16x128xbf16>, vector<128x128xbf16>, vector<16x128xf32> -> vector<16x128xf32>
    %c0_10 = arith.constant 0 : index
    %c0_11 = arith.constant 0 : index
    %15 = vector.load %arg5[%c0_10, %c0_11] : memref<1x128xf32, #tpu.memory_space<vmem>>, vector<1x128xf32>
    %16 = vector.broadcast %15 : vector<1x128xf32> to vector<16x128xf32>
    %17 = arith.addf %14, %16 : vector<16x128xf32>
    %cst_12 = arith.constant 0.000000e+00 : f32
    %18 = vector.broadcast %cst_12 : f32 to vector<16x128xf32>
    %19 = arith.cmpf ogt, %17, %18 : vector<16x128xf32>
    %20 = math.exp %17 : vector<16x128xf32>
    %cst_13 = arith.constant 1.000000e+00 : f32
    %21 = vector.broadcast %cst_13 : f32 to vector<16x128xf32>
    %22 = arith.subf %20, %21 : vector<16x128xf32>
    %23 = arith.select %19, %17, %22 : vector<16x128xi1>, vector<16x128xf32>
    %24 = arith.truncf %23 : vector<16x128xf32> to vector<16x128xbf16>
    %c0_14 = arith.constant 0 : index
    %c0_15 = arith.constant 0 : index
    %25 = vector.load %arg6[%c0_14, %c0_15] : memref<128x128xbf16, #tpu.memory_space<vmem>>, vector<128x128xbf16>
    %cst_16 = arith.constant dense<0.000000e+00> : vector<16x128xf32>
    %26 = tpu.matmul %24, %25, %cst_16 {dimension_numbers = #tpu.dot_dimension_numbers<[1], [0], [0], [1], [0, 0, 1, 1], [], []>} : vector<16x128xbf16>, vector<128x128xbf16>, vector<16x128xf32> -> vector<16x128xf32>
    %c0_17 = arith.constant 0 : index
    %c0_18 = arith.constant 0 : index
    %27 = vector.load %arg7[%c0_17, %c0_18] : memref<1x128xf32, #tpu.memory_space<vmem>>, vector<1x128xf32>
    %28 = vector.broadcast %27 : vector<1x128xf32> to vector<16x128xf32>
    %29 = arith.addf %26, %28 : vector<16x128xf32>
    %30 = arith.truncf %29 : vector<16x128xf32> to vector<16x128xbf16>
    %c0_19 = arith.constant 0 : index
    %c0_20 = arith.constant 0 : index
    %31 = vector.load %arg8[%c0_19, %c0_20] : memref<16x128xbf16, #tpu.memory_space<vmem>>, vector<16x128xbf16>
    tpu.vector_store %arg8[%c0_19, %c0_20], %30 {strides = array<i32>} : memref<16x128xbf16, #tpu.memory_space<vmem>>, vector<16x128xbf16>,
    return
  }
  func.func @transform_0(%arg0: i32) -> (i32, i32) {
    %c0_i32 = arith.constant 0 : i32
    %c0_i32_0 = arith.constant 0 : i32
    return %arg0, %c0_i32 : i32, i32
  }
  func.func @transform_1(%arg0: i32) -> (i32, i32) {
    %c0_i32 = arith.constant 0 : i32
    %c0_i32_0 = arith.constant 0 : i32
    %c0_i32_1 = arith.constant 0 : i32
    return %c0_i32, %c0_i32_0 : i32, i32
  }
  func.func @transform_2(%arg0: i32) -> (i32, i32) {
    %c0_i32 = arith.constant 0 : i32
    %c0_i32_0 = arith.constant 0 : i32
    %c0_i32_1 = arith.constant 0 : i32
    return %c0_i32, %c0_i32_0 : i32, i32
  }
  func.func @transform_3(%arg0: i32) -> (i32, i32) {
    %c0_i32 = arith.constant 0 : i32
    %c0_i32_0 = arith.constant 0 : i32
    %c0_i32_1 = arith.constant 0 : i32
    return %c0_i32, %c0_i32_0 : i32, i32
  }
  func.func @transform_4(%arg0: i32) -> (i32, i32) {
    %c0_i32 = arith.constant 0 : i32
    %c0_i32_0 = arith.constant 0 : i32
    %c0_i32_1 = arith.constant 0 : i32
    return %c0_i32, %c0_i32_0 : i32, i32
  }
  func.func @transform_5(%arg0: i32) -> (i32, i32) {
    %c0_i32 = arith.constant 0 : i32
    %c0_i32_0 = arith.constant 0 : i32
    %c0_i32_1 = arith.constant 0 : i32
    return %c0_i32, %c0_i32_0 : i32, i32
  }
  func.func @transform_6(%arg0: i32) -> (i32, i32) {
    %c0_i32 = arith.constant 0 : i32
    %c0_i32_0 = arith.constant 0 : i32
    %c0_i32_1 = arith.constant 0 : i32
    return %c0_i32, %c0_i32_0 : i32, i32
  }
  func.func @transform_7(%arg0: i32) -> (i32, i32) {
    %c0_i32 = arith.constant 0 : i32
    %c0_i32_0 = arith.constant 0 : i32
    return %arg0, %c0_i32 : i32, i32
  }
}

</mosaic_0001>

<llo_original>
// kernel: tpu_custom_call.1
$region0: #{tpu_custom_call.1}
  #allocation0 [shape = 'u32[]', space=smem, size = 0x4, offset = 0x4, fixed_abs, tag = 'smem constant byte address 0x4 - core index']
  #allocation1 [shape = 'u32[144,128]{1,0:T(1,128)}', space=vmem, size = 0x12000, scoped, tag = 'internal scratch']
  %s0 = inlined_call_operand.hbm [shape: bf16[16,32], index: 0, kind: input, shape index: {}]
  %s1 = inlined_call_operand.hbm [shape: bf16[32,128], index: 1, kind: input, shape index: {}]
  %s2 = inlined_call_operand.vmem [shape: f32[1,128], index: 2, kind: input, shape index: {}]
  %s3 = inlined_call_operand.hbm [shape: bf16[128,128], index: 3, kind: input, shape index: {}]
  %s4 = inlined_call_operand.vmem [shape: f32[1,128], index: 4, kind: input, shape index: {}]
  %s5 = inlined_call_operand.hbm [shape: bf16[128,128], index: 5, kind: input, shape index: {}]
  %s6 = inlined_call_operand.vmem [shape: f32[1,128], index: 6, kind: input, shape index: {}]
  %s7 = inlined_call_operand.hbm [shape: bf16[16,128], index: 7, kind: output, shape index: {}]
  %s8 = sld [smem:[#allocation0]]
  $region54: #{tpu_custom_call.1} parent=0
    _
  %s10 = ssub.s32 1, %s8
  %s11 = scalar_select 0, %s10, %s8
  $region1: #{tpu_custom_call.1} parent=0
    #allocation2 [shape = 'u8[4096]{0}', space=vmem, size = 0x1000, scoped, tag = 'input window, operand 0, single buffered']
    #allocation3 [shape = 's32[1]{0}', space=sflag, size = 0x4, scoped, tag = 'scoped memory for tpu_custom_call.1']
    #allocation4 [shape = 's32[1]{0}', space=sflag, size = 0x4, scoped, tag = 'scoped memory for tpu_custom_call.1']
    #allocation5 [shape = 'u8[8192]{0}', space=vmem, size = 0x2000, scoped, tag = 'input window, operand 1, single buffered']
    #allocation6 [shape = 's32[1]{0}', space=sflag, size = 0x4, scoped, tag = 'scoped memory for tpu_custom_call.1']
    #allocation7 [shape = 'u8[32768]{0}', space=vmem, size = 0x8000, scoped, tag = 'input window, operand 3, single buffered']
    #allocation8 [shape = 'u8[32768]{0}', space=vmem, size = 0x8000, scoped, tag = 'input window, operand 5, single buffered']
    #allocation9 [shape = 's32[1]{0}', space=sflag, size = 0x4, scoped, tag = 'scoped memory for tpu_custom_call.1']
    #allocation10 [shape = 'u8[4096]{0}', space=vmem, size = 0x1000, scoped, tag = 'output window, operand 0, single buffered']
    %12 = vsyncpa [#allocation3], 0
    %13 = vsyncpa [#allocation6], 0
    %14 = vsyncpa [#allocation9], 0
    %15 = vsyncpa [#allocation4], 0
    // Predicated region
    $region2: #{tpu_custom_call.1} parent=1 // pred_check
      _
    $region3: #{tpu_custom_call.1} parent=1 // pred_check_branch
      %17 = sbr.rel (0) target = $region5
    $region4: #{tpu_custom_call.1} parent=1 // pred_region
      %s19 = ssub.s32 128, 128
      %20 = vsyncadd [#allocation3], %s19
      %s21 = sshll.u32 [#allocation2], 4
      %s22 = int_to_ptr.vmem [resolvable:$true] %s21
      %27 = dma.hbm_to_vmem [thread:$0]  %s0, 128, %s22, [#allocation3], 64, 64, 4
    $region5: #{tpu_custom_call.1} parent=1 // pred_fallthru
      _
    // Predicated region
    $region6: #{tpu_custom_call.1} parent=1 // pred_check
      _
    $region7: #{tpu_custom_call.1} parent=1 // pred_check_branch
      %29 = sbr.rel (0) target = $region9
    $region8: #{tpu_custom_call.1} parent=1 // pred_region
      %s31 = ssub.s32 256, 256
      %32 = vsyncadd [#allocation6], %s31
      %s33 = sshll.u32 [#allocation5], 4
      %s34 = int_to_ptr.vmem [resolvable:$true] %s33
      %39 = dma.hbm_to_vmem [thread:$0]  %s1, 256, %s34, [#allocation6], 64, 64, 4
    $region9: #{tpu_custom_call.1} parent=1 // pred_fallthru
      _
    // Predicated region
    $region10: #{tpu_custom_call.1} parent=1 // pred_check
      _
    $region11: #{tpu_custom_call.1} parent=1 // pred_check_branch
      %41 = sbr.rel (0) target = $region13
    $region12: #{tpu_custom_call.1} parent=1 // pred_region
      _
    $region13: #{tpu_custom_call.1} parent=1 // pred_fallthru
      _
    // Predicated region
    $region14: #{tpu_custom_call.1} parent=1 // pred_check
      _
    $region15: #{tpu_custom_call.1} parent=1 // pred_check_branch
      %43 = sbr.rel (0) target = $region17
    $region16: #{tpu_custom_call.1} parent=1 // pred_region
      %s45 = ssub.s32 1024, 1024
      %46 = vsyncadd [#allocation6], %s45
      %s47 = sshll.u32 [#allocation7], 4
      %s48 = int_to_ptr.vmem [resolvable:$true] %s47
      %53 = dma.hbm_to_vmem [thread:$0]  %s3, 1024, %s48, [#allocation6], 64, 64, 4
    $region17: #{tpu_custom_call.1} parent=1 // pred_fallthru
      _
    // Predicated region
    $region18: #{tpu_custom_call.1} parent=1 // pred_check
      _
    $region19: #{tpu_custom_call.1} parent=1 // pred_check_branch
      %55 = sbr.rel (0) target = $region21
    $region20: #{tpu_custom_call.1} parent=1 // pred_region
      _
    $region21: #{tpu_custom_call.1} parent=1 // pred_fallthru
      _
    // Predicated region
    $region22: #{tpu_custom_call.1} parent=1 // pred_check
      _
    $region23: #{tpu_custom_call.1} parent=1 // pred_check_branch
      %57 = sbr.rel (0) target = $region25
    $region24: #{tpu_custom_call.1} parent=1 // pred_region
      %s59 = ssub.s32 1024, 1024
      %60 = vsyncadd [#allocation9], %s59
      %s61 = sshll.u32 [#allocation8], 4
      %s62 = int_to_ptr.vmem [resolvable:$true] %s61
      %67 = dma.hbm_to_vmem [thread:$0]  %s5, 1024, %s62, [#allocation9], 64, 64, 4
    $region25: #{tpu_custom_call.1} parent=1 // pred_fallthru
      _
    // Predicated region
    $region26: #{tpu_custom_call.1} parent=1 // pred_check
      _
    $region27: #{tpu_custom_call.1} parent=1 // pred_check_branch
      %69 = sbr.rel (0) target = $region29
    $region28: #{tpu_custom_call.1} parent=1 // pred_region
      _
    $region29: #{tpu_custom_call.1} parent=1 // pred_fallthru
      _
    // Predicated region
    $region30: #{tpu_custom_call.1} parent=1 // pred_check
      _
    $region31: #{tpu_custom_call.1} parent=1 // pred_check_branch
      %71 = sbr.rel (0) target = $region33
    $region32: #{tpu_custom_call.1} parent=1 // pred_region
      %72 = dma.done [#allocation3], 128
    $region33: #{tpu_custom_call.1} parent=1 // pred_fallthru
      _
    // Predicated region
    $region34: #{tpu_custom_call.1} parent=1 // pred_check
      _
    $region35: #{tpu_custom_call.1} parent=1 // pred_check_branch
      %74 = sbr.rel (0) target = $region37
    $region36: #{tpu_custom_call.1} parent=1 // pred_region
      %75 = dma.done [#allocation6], 256
    $region37: #{tpu_custom_call.1} parent=1 // pred_fallthru
      _
    // Predicated region
    $region38: #{tpu_custom_call.1} parent=1 // pred_check
      _
    $region39: #{tpu_custom_call.1} parent=1 // pred_check_branch
      %77 = sbr.rel (0) target = $region41
    $region40: #{tpu_custom_call.1} parent=1 // pred_region
      %78 = dma.done [#allocation6], 1024
    $region41: #{tpu_custom_call.1} parent=1 // pred_fallthru
      _
    // Predicated region
    $region42: #{tpu_custom_call.1} parent=1 // pred_check
      _
    $region43: #{tpu_custom_call.1} parent=1 // pred_check_branch
      %80 = sbr.rel (0) target = $region45
    $region44: #{tpu_custom_call.1} parent=1 // pred_region
      %81 = dma.done [#allocation9], 1024
    $region45: #{tpu_custom_call.1} parent=1 // pred_fallthru
      _
    %v83 = vld [vmem:[#allocation2] sm:$0xf]
    %v84 = vld [vmem:[#allocation2 + $0x4] sm:$0xf]
    %v85 = vld [vmem:[#allocation5] sm:$0xf]
    %v86 = vld [vmem:[#allocation5 + $0x4] sm:$0xf]
    %v87 = vld [vmem:[#allocation5 + $0x8] sm:$0xf]
    %v88 = vld [vmem:[#allocation5 + $0xc] sm:$0xf]
    %v89 = vld [vmem:[%s2] sm:$0x1]
    %v91 = vlaneseq
    %v92 = vshrl.u32 %v91, 7
    %v93 = vsub.s32 0, %v92
    %v94 = vrot.slane %v89, %v93
    %v98 = vunpack.c.l.b16 %v83
    %v99 = vunpack.c.l.b16 %v84
    %v100 = vpack.c.b16 %v99, %v98
    %v105 = vunpack.c.l.b16 %v85
    %v106 = vunpack.c.l.b16 %v86
    %v107 = vunpack.c.l.b16 %v87
    %v108 = vunpack.c.l.b16 %v88
    %v109 = vpack.c.b16 %v106, %v105
    %v110 = vpack.c.b16 %v108, %v107
    %vm113 = vcmask 261120
    %v115 = vsel %vm113, %v100, 0
    %117 = vmatprep.subr.bf16.mxu0 0
    %118 = vmatpush1.bf16.msra.mxu0 0
    %119 = vmatprep.subr.bf16.mxu0 0
    %120 = vmatpush1.bf16.msra.mxu0 0
    %121 = vmatprep.subr.bf16.mxu0 0
    %122 = vmatpush1.bf16.msra.mxu0 0
    %123 = vmatprep.subr.bf16.mxu0 0
    %124 = vmatpush1.bf16.msra.mxu0 0
    %125 = vmatprep.subr.bf16.mxu0 0
    %126 = vmatpush1.bf16.msra.mxu0 0
    %127 = vmatprep.subr.bf16.mxu0 0
    %128 = vmatpush1.bf16.msra.mxu0 0
    %129 = vmatprep.subr.bf16.mxu0 0
    %130 = vmatpush1.bf16.msra.mxu0 %v110
    %131 = vmatprep.subr.bf16.mxu0 0
    %132 = vmatpush1.bf16.msra.mxu0 %v109
    %133 = vmatprep.subr.bf16.mxu0 0
    %134 = vmatpush2.bf16.msra.mxu0 0
    %135 = vmatprep.subr.bf16.mxu0 0
    %136 = vmatpush2.bf16.msra.mxu0 0
    %137 = vmatprep.subr.bf16.mxu0 0
    %138 = vmatpush2.bf16.msra.mxu0 0
    %139 = vmatprep.subr.bf16.mxu0 0
    %140 = vmatpush2.bf16.msra.mxu0 0
    %141 = vmatprep.subr.bf16.mxu0 0
    %142 = vmatpush2.bf16.msra.mxu0 0
    %143 = vmatprep.subr.bf16.mxu0 0
    %144 = vmatpush2.bf16.msra.mxu0 0
    %145 = vmatprep.subr.bf16.mxu0 0
    %146 = vmatpush2.bf16.msra.mxu0 0
    %147 = vmatprep.subr.bf16.mxu0 0
    %148 = vmatpush2.bf16.msra.mxu0 0
    %149 = vmatprep.mubr.bf16.mxu0 0
    %150 = vmatmul.mubr.bf16.gmra.mxu0 %v115
    %v151 = vpop.f32.mrf.mxu0
    %v152 = vadd.f32 %v94, %v151
    %v153 = vpop.f32.mrf.mxu0
    %v154 = vpop.f32.mrf.mxu0
    %v155 = vadd.f32 %v94, %v154
    %v156 = vpop.f32.mrf.mxu0
    %157 = vdwg.mxu0
    %vm158 = vcmp.gt.f32.partialorder %v152, 0.0
    %vm159 = vcmp.gt.f32.partialorder %v155, 0.0
    %v160 = vmul.f32 %v152, 1.442695
    %v161 = vpow.pop %v160
    %v162 = vmul.f32 %v155, 1.442695
    %v163 = vpow.pop %v162
    %v164 = vsub.f32 %v161, 1.0
    %v165 = vsub.f32 %v163, 1.0
    %v166 = vsel %vm158, %v152, %v164
    %v167 = vsel %vm159, %v155, %v165
    %v168 = vpack.c.bf16 %v167, %v166
    %v169 = vld [vmem:[#allocation7] sm:$0xf]
    %v170 = vld [vmem:[#allocation7 + $0x4] sm:$0xf]
    %v171 = vld [vmem:[#allocation7 + $0x8] sm:$0xf]
    %v172 = vld [vmem:[#allocation7 + $0xc] sm:$0xf]
    %v173 = vld [vmem:[#allocation7 + $0x10] sm:$0xf]
    %v174 = vld [vmem:[#allocation7 + $0x14] sm:$0xf]
    %v175 = vld [vmem:[#allocation7 + $0x18] sm:$0xf]
    %v176 = vld [vmem:[#allocation7 + $0x1c] sm:$0xf]
    %v177 = vld [vmem:[#allocation7 + $0x20] sm:$0xf]
    %v178 = vld [vmem:[#allocation7 + $0x24] sm:$0xf]
    %v179 = vld [vmem:[#allocation7 + $0x28] sm:$0xf]
    %v180 = vld [vmem:[#allocation7 + $0x2c] sm:$0xf]
    %v181 = vld [vmem:[#allocation7 + $0x30] sm:$0xf]
    %v182 = vld [vmem:[#allocation7 + $0x34] sm:$0xf]
    %v183 = vld [vmem:[#allocation7 + $0x38] sm:$0xf]
    %v184 = vld [vmem:[#allocation7 + $0x3c] sm:$0xf]
    %v185 = vld [vmem:[%s4] sm:$0x1]
    %v187 = vlaneseq
    %v188 = vshrl.u32 %v187, 7
    %v189 = vsub.s32 0, %v188
    %v190 = vrot.slane %v185, %v189
    %v208 = vunpack.c.l.b16 %v169
    %v209 = vunpack.c.l.b16 %v170
    %v210 = vunpack.c.l.b16 %v171
    %v211 = vunpack.c.l.b16 %v172
    %v212 = vunpack.c.l.b16 %v173
    %v213 = vunpack.c.l.b16 %v174
    %v214 = vunpack.c.l.b16 %v175
    %v215 = vunpack.c.l.b16 %v176
    %v216 = vunpack.c.l.b16 %v177
    %v217 = vunpack.c.l.b16 %v178
    %v218 = vunpack.c.l.b16 %v179
    %v219 = vunpack.c.l.b16 %v180
    %v220 = vunpack.c.l.b16 %v181
    %v221 = vunpack.c.l.b16 %v182
    %v222 = vunpack.c.l.b16 %v183
    %v223 = vunpack.c.l.b16 %v184
    %v224 = vpack.c.b16 %v209, %v208
    %v225 = vpack.c.b16 %v211, %v210
    %v226 = vpack.c.b16 %v213, %v212
    %v227 = vpack.c.b16 %v215, %v214
    %v228 = vpack.c.b16 %v217, %v216
    %v229 = vpack.c.b16 %v219, %v218
    %v230 = vpack.c.b16 %v221, %v220
    %v231 = vpack.c.b16 %v223, %v222
    %240 = vmatprep.subr.bf16.mxu0 0
    %241 = vmatpush1.bf16.msra.mxu0 %v231
    %242 = vmatprep.subr.bf16.mxu0 0
    %243 = vmatpush1.bf16.msra.mxu0 %v230
    %244 = vmatprep.subr.bf16.mxu0 0
    %245 = vmatpush1.bf16.msra.mxu0 %v229
    %246 = vmatprep.subr.bf16.mxu0 0
    %247 = vmatpush1.bf16.msra.mxu0 %v228
    %248 = vmatprep.subr.bf16.mxu0 0
    %249 = vmatpush1.bf16.msra.mxu0 %v227
    %250 = vmatprep.subr.bf16.mxu0 0
    %251 = vmatpush1.bf16.msra.mxu0 %v226
    %252 = vmatprep.subr.bf16.mxu0 0
    %253 = vmatpush1.bf16.msra.mxu0 %v225
    %254 = vmatprep.subr.bf16.mxu0 0
    %255 = vmatpush1.bf16.msra.mxu0 %v224
    %256 = vmatprep.subr.bf16.mxu0 0
    %257 = vmatpush2.bf16.msra.mxu0 0
    %258 = vmatprep.subr.bf16.mxu0 0
    %259 = vmatpush2.bf16.msra.mxu0 0
    %260 = vmatprep.subr.bf16.mxu0 0
    %261 = vmatpush2.bf16.msra.mxu0 0
    %262 = vmatprep.subr.bf16.mxu0 0
    %263 = vmatpush2.bf16.msra.mxu0 0
    %264 = vmatprep.subr.bf16.mxu0 0
    %265 = vmatpush2.bf16.msra.mxu0 0
    %266 = vmatprep.subr.bf16.mxu0 0
    %267 = vmatpush2.bf16.msra.mxu0 0
    %268 = vmatprep.subr.bf16.mxu0 0
    %269 = vmatpush2.bf16.msra.mxu0 0
    %270 = vmatprep.subr.bf16.mxu0 0
    %271 = vmatpush2.bf16.msra.mxu0 0
    %272 = vmatprep.mubr.bf16.mxu0 0
    %273 = vmatmul.mubr.bf16.gmra.mxu0 %v168
    %v274 = vpop.f32.mrf.mxu0
    %v275 = vadd.f32 %v190, %v274
    %v276 = vpop.f32.mrf.mxu0
    %v277 = vpop.f32.mrf.mxu0
    %v278 = vadd.f32 %v190, %v277
    %v279 = vpop.f32.mrf.mxu0
    %280 = vdwg.mxu0
    %vm281 = vcmp.gt.f32.partialorder %v275, 0.0
    %vm282 = vcmp.gt.f32.partialorder %v278, 0.0
    %v283 = vmul.f32 %v275, 1.442695
    %v284 = vpow.pop %v283
    %v285 = vmul.f32 %v278, 1.442695
    %v286 = vpow.pop %v285
    %v287 = vsub.f32 %v284, 1.0
    %v288 = vsub.f32 %v286, 1.0
    %v289 = vsel %vm281, %v275, %v287
    %v290 = vsel %vm282, %v278, %v288
    %v291 = vpack.c.bf16 %v290, %v289
    %v292 = vld [vmem:[#allocation8] sm:$0xf]
    %v293 = vld [vmem:[#allocation8 + $0x4] sm:$0xf]
    %v294 = vld [vmem:[#allocation8 + $0x8] sm:$0xf]
    %v295 = vld [vmem:[#allocation8 + $0xc] sm:$0xf]
    %v296 = vld [vmem:[#allocation8 + $0x10] sm:$0xf]
    %v297 = vld [vmem:[#allocation8 + $0x14] sm:$0xf]
    %v298 = vld [vmem:[#allocation8 + $0x18] sm:$0xf]
    %v299 = vld [vmem:[#allocation8 + $0x1c] sm:$0xf]
    %v300 = vld [vmem:[#allocation8 + $0x20] sm:$0xf]
    %v301 = vld [vmem:[#allocation8 + $0x24] sm:$0xf]
    %v302 = vld [vmem:[#allocation8 + $0x28] sm:$0xf]
    %v303 = vld [vmem:[#allocation8 + $0x2c] sm:$0xf]
    %v304 = vld [vmem:[#allocation8 + $0x30] sm:$0xf]
    %v305 = vld [vmem:[#allocation8 + $0x34] sm:$0xf]
    %v306 = vld [vmem:[#allocation8 + $0x38] sm:$0xf]
    %v307 = vld [vmem:[#allocation8 + $0x3c] sm:$0xf]
    %v308 = vld [vmem:[%s6] sm:$0x1]
    %v310 = vlaneseq
    %v311 = vshrl.u32 %v310, 7
    %v312 = vsub.s32 0, %v311
    %v313 = vrot.slane %v308, %v312
    %v331 = vunpack.c.l.b16 %v292
    %v332 = vunpack.c.l.b16 %v293
    %v333 = vunpack.c.l.b16 %v294
    %v334 = vunpack.c.l.b16 %v295
    %v335 = vunpack.c.l.b16 %v296
    %v336 = vunpack.c.l.b16 %v297
    %v337 = vunpack.c.l.b16 %v298
    %v338 = vunpack.c.l.b16 %v299
    %v339 = vunpack.c.l.b16 %v300
    %v340 = vunpack.c.l.b16 %v301
    %v341 = vunpack.c.l.b16 %v302
    %v342 = vunpack.c.l.b16 %v303
    %v343 = vunpack.c.l.b16 %v304
    %v344 = vunpack.c.l.b16 %v305
    %v345 = vunpack.c.l.b16 %v306
    %v346 = vunpack.c.l.b16 %v307
    %v347 = vpack.c.b16 %v332, %v331
    %v348 = vpack.c.b16 %v334, %v333
    %v349 = vpack.c.b16 %v336, %v335
    %v350 = vpack.c.b16 %v338, %v337
    %v351 = vpack.c.b16 %v340, %v339
    %v352 = vpack.c.b16 %v342, %v341
    %v353 = vpack.c.b16 %v344, %v343
    %v354 = vpack.c.b16 %v346, %v345
    %363 = vmatprep.subr.bf16.mxu0 0
    %364 = vmatpush1.bf16.msra.mxu0 %v354
    %365 = vmatprep.subr.bf16.mxu0 0
    %366 = vmatpush1.bf16.msra.mxu0 %v353
    %367 = vmatprep.subr.bf16.mxu0 0
    %368 = vmatpush1.bf16.msra.mxu0 %v352
    %369 = vmatprep.subr.bf16.mxu0 0
    %370 = vmatpush1.bf16.msra.mxu0 %v351
    %371 = vmatprep.subr.bf16.mxu0 0
    %372 = vmatpush1.bf16.msra.mxu0 %v350
    %373 = vmatprep.subr.bf16.mxu0 0
    %374 = vmatpush1.bf16.msra.mxu0 %v349
    %375 = vmatprep.subr.bf16.mxu0 0
    %376 = vmatpush1.bf16.msra.mxu0 %v348
    %377 = vmatprep.subr.bf16.mxu0 0
    %378 = vmatpush1.bf16.msra.mxu0 %v347
    %379 = vmatprep.subr.bf16.mxu0 0
    %380 = vmatpush2.bf16.msra.mxu0 0
    %381 = vmatprep.subr.bf16.mxu0 0
    %382 = vmatpush2.bf16.msra.mxu0 0
    %383 = vmatprep.subr.bf16.mxu0 0
    %384 = vmatpush2.bf16.msra.mxu0 0
    %385 = vmatprep.subr.bf16.mxu0 0
    %386 = vmatpush2.bf16.msra.mxu0 0
    %387 = vmatprep.subr.bf16.mxu0 0
    %388 = vmatpush2.bf16.msra.mxu0 0
    %389 = vmatprep.subr.bf16.mxu0 0
    %390 = vmatpush2.bf16.msra.mxu0 0
    %391 = vmatprep.subr.bf16.mxu0 0
    %392 = vmatpush2.bf16.msra.mxu0 0
    %393 = vmatprep.subr.bf16.mxu0 0
    %394 = vmatpush2.bf16.msra.mxu0 0
    %395 = vmatprep.mubr.bf16.mxu0 0
    %396 = vmatmul.mubr.bf16.gmra.mxu0 %v291
    %v397 = vpop.f32.mrf.mxu0
    %v398 = vadd.f32 %v313, %v397
    %v399 = vpop.f32.mrf.mxu0
    %v400 = vpop.f32.mrf.mxu0
    %v401 = vadd.f32 %v313, %v400
    %v402 = vpop.f32.mrf.mxu0
    %403 = vdwg.mxu0
    %v404 = vpack.c.bf16 %v401, %v398
    %v406 = vunpack.c.l.b16 %v404
    %v407 = vunpack.c.h.b16 %v404
    %v408 = vpack.c.b16 %v406, %v406
    %v409 = vpack.c.b16 %v407, %v407
    %412 = vst [vmem:[#allocation10] sm:$0xf] %v408
    %413 = vst [vmem:[#allocation10 + $0x4] sm:$0xf] %v409
    // Predicated region
    $region46: #{tpu_custom_call.1} parent=1 // pred_check
      _
    $region47: #{tpu_custom_call.1} parent=1 // pred_check_branch
      %415 = sbr.rel (0) target = $region49
    $region48: #{tpu_custom_call.1} parent=1 // pred_region
      %s417 = ssub.s32 128, 128
      %418 = vsyncadd [#allocation4], %s417
      %s419 = sshll.u32 [#allocation10], 4
      %s420 = int_to_ptr.vmem [resolvable:$true] %s419
      %425 = dma.vmem_to_hbm [thread:$0]  %s420, 128, %s7, [#allocation4], 64, 64, 4
    $region49: #{tpu_custom_call.1} parent=1 // pred_fallthru
      _
    // Predicated region
    $region50: #{tpu_custom_call.1} parent=1 // pred_check
      _
    $region51: #{tpu_custom_call.1} parent=1 // pred_check_branch
      %427 = sbr.rel (0) target = $region53
    $region52: #{tpu_custom_call.1} parent=1 // pred_region
      %428 = dma.done [#allocation4], 128
    $region53: #{tpu_custom_call.1} parent=1 // pred_fallthru
      _
    %429 = vsyncpa [#allocation3], 1
    %430 = vsyncpa [#allocation6], 1
    %431 = vsyncpa [#allocation9], 1
    %432 = vsyncpa [#allocation4], 1

</llo_original>
